<compile_context>
chip_gen: v7x
topology: tpu7x:2x2x1
jax: 0.10.0
libtpu: 0.0.40
codegen_flags: <defaults>
</compile_context>

<pallas_src>
import functools

import jax
import jax.numpy as jnp
from jax import lax
from jax.experimental import pallas as pl
from jax.experimental.pallas import tpu as pltpu

EPSILON = 0.1            # module default
REDUCTION = "mean"       # module default

# Conservative budget for the double-buffered preds tile (safe on v7x's 64 MiB
# VMEM as well as v5e/v6e's 128 MiB).
_PREDS_VMEM_BUDGET_BYTES = 16 * 1024 * 1024
_MAX_TILE_N = 2048


def _ls_ce_kernel(preds_ref, target_ref, nll_ref, smooth_ref, *, n_total, tile_n):
    """Per-tile: write per-row NLL and per-row -sum(log_softmax)."""
    i = pl.program_id(0)

    x = preds_ref[...].astype(jnp.float32)                     # (tn, C)
    tgt = target_ref[...]                                      # (tn, 1) int32
    tn, c = x.shape

    # Numerically stable logsumexp along classes (last axis); log_preds itself
    # is never materialized.
    m = jnp.max(x, axis=-1, keepdims=True)                     # (tn, 1)
    lse = m + jnp.log(jnp.sum(jnp.exp(x - m), axis=-1, keepdims=True))

    # x[row, target[row]] via one-hot compare against an iota over classes.
    class_ids = lax.broadcasted_iota(jnp.int32, x.shape, 1)
    picked_logit = jnp.sum(jnp.where(class_ids == tgt, x, 0.0),
                           axis=-1, keepdims=True)              # (tn, 1)

    nll_row = lse - picked_logit                                # -log_softmax[target]
    neg_row_sum = float(c) * lse - jnp.sum(x, axis=-1, keepdims=True)  # -sum(log_softmax)

    # Mask rows of the (possibly ragged) last tile.
    row_ids = i * tile_n + lax.broadcasted_iota(jnp.int32, (tn, 1), 0)
    valid = row_ids < n_total
    nll_ref[...] = jnp.where(valid, nll_row, 0.0)
    smooth_ref[...] = jnp.where(valid, neg_row_sum, 0.0)


def _pick_tile_n(n, c, dtype):
    """Largest batch tile that fits the VMEM budget (double-buffered preds)."""
    sublane = 16 if jnp.dtype(dtype) == jnp.dtype(jnp.bfloat16) else 8
    itemsize = jnp.dtype(dtype).itemsize
    cap = _PREDS_VMEM_BUDGET_BYTES // (2 * itemsize * max(c, 1))
    cap = int(max(sublane, min(cap, _MAX_TILE_N)))
    cap = (cap // sublane) * sublane
    n_fit = max(sublane, (n // sublane) * sublane)
    return max(sublane, min(cap, n_fit))


def label_smoothing_cross_entropy(preds, target, epsilon=EPSILON,
                                  reduction=REDUCTION, tile_n=None):
    """preds: (N, C) float; target: (N,) int.

    Returns a scalar for reduction in {'mean', 'sum'} or an (N,) vector for 'none'.
    """
    n, c = preds.shape
    if tile_n is None:
        tile_n = _pick_tile_n(n, c, preds.dtype)
    target2d = target.astype(jnp.int32).reshape(n, 1)

    kernel = functools.partial(_ls_ce_kernel, n_total=n, tile_n=tile_n)

    nll_rows, smooth_rows = pl.pallas_call(
        kernel,
        out_shape=(jax.ShapeDtypeStruct((n, 1), jnp.float32),
                   jax.ShapeDtypeStruct((n, 1), jnp.float32)),
        grid_spec=pltpu.PrefetchScalarGridSpec(
            num_scalar_prefetch=0,
            grid=(pl.cdiv(n, tile_n),),
            in_specs=[
                pl.BlockSpec((tile_n, c), lambda i: (i, 0)),
                pl.BlockSpec((tile_n, 1), lambda i: (i, 0)),
            ],
            out_specs=[
                pl.BlockSpec((tile_n, 1), lambda i: (i, 0)),
                pl.BlockSpec((tile_n, 1), lambda i: (i, 0)),
            ],
        ),
        compiler_params=pltpu.CompilerParams(
            dimension_semantics=("parallel",),      # no carry -> both TCs on v7x
            vmem_limit_bytes=32 * 1024 * 1024,
        ),
    )(preds, target2d)

    nll_rows = nll_rows[:, 0]
    smooth_rows = smooth_rows[:, 0]

    if reduction == "mean":
        # Folded constants: eps/(N*C) and (1-eps)/N — no runtime divides per row.
        return ((epsilon / (n * c)) * jnp.sum(smooth_rows)
                + ((1.0 - epsilon) / n) * jnp.sum(nll_rows))
    elif reduction == "sum":
        return ((epsilon / c) * jnp.sum(smooth_rows)
                + (1.0 - epsilon) * jnp.sum(nll_rows))
    else:  # 'none'
        return epsilon * (smooth_rows / c) + (1.0 - epsilon) * nll_rows


def _reference(preds, target, epsilon=EPSILON):
    log_preds = jax.nn.log_softmax(preds.astype(jnp.float32), axis=-1)
    n, c = preds.shape
    nll = -jnp.take_along_axis(log_preds, target[:, None].astype(jnp.int32),
                               axis=-1).squeeze(-1).mean()
    loss = (-log_preds.sum(axis=-1)).mean()
    return epsilon * (loss / c) + (1.0 - epsilon) * nll


if __name__ == "__main__":
    key = jax.random.PRNGKey(0)
    ok = True

    # Case 1: small shape, auto tile (single grid step).
    kp, kt = jax.random.split(key)
    N, C = 16, 32
    preds = jax.random.normal(kp, (N, C), dtype=jnp.float32)
    target = jax.random.randint(kt, (N,), 0, C, dtype=jnp.int32)
    out = jax.block_until_ready(label_smoothing_cross_entropy(preds, target))
    ref = _reference(preds, target)
    ok &= bool(jnp.allclose(out, ref, rtol=1e-5, atol=1e-5))

    # Case 2: multi-step grid with an explicitly small tile (exercises the
    # "parallel" batch axis and cdiv grid).
    kp2, kt2 = jax.random.split(jax.random.PRNGKey(1))
    N2, C2 = 24, 32
    preds2 = jax.random.normal(kp2, (N2, C2), dtype=jnp.float32)
    target2 = jax.random.randint(kt2, (N2,), 0, C2, dtype=jnp.int32)
    out2 = jax.block_until_ready(
        label_smoothing_cross_entropy(preds2, target2, tile_n=8))
    ref2 = _reference(preds2, target2)
    ok &= bool(jnp.allclose(out2, ref2, rtol=1e-5, atol=1e-5))

    assert ok, (out, ref, out2, ref2)
    print("KERNEL_OK")
</pallas_src>

<mosaic_0001>
module attributes {stable_mosaic.version = 11 : i64} {
  func.func @_ls_ce_kernel(%arg0: i32, %arg1: memref<16x32xf32, #tpu.memory_space<vmem>>, %arg2: memref<16x1xi32, #tpu.memory_space<vmem>>, %arg3: memref<16x1xf32, #tpu.memory_space<vmem>>, %arg4: memref<16x1xf32, #tpu.memory_space<vmem>>) attributes {dimension_semantics = [#tpu.dimension_semantics<parallel>], iteration_bounds = array<i64: 1>, scalar_prefetch = 0 : i64, scratch_operands = 0 : i64, tpu.core_type = #tpu.core_type<tc>, window_params = [{transform_indices = @transform_0, window_bounds = array<i64: 16, 32>}, {transform_indices = @transform_1, window_bounds = array<i64: 16, 1>}, {transform_indices = @transform_2, window_bounds = array<i64: 16, 1>}, {transform_indices = @transform_3, window_bounds = array<i64: 16, 1>}]} {
    %c0 = arith.constant 0 : index
    %c0_0 = arith.constant 0 : index
    %0 = vector.load %arg1[%c0, %c0_0] : memref<16x32xf32, #tpu.memory_space<vmem>>, vector<16x32xf32>
    %c0_1 = arith.constant 0 : index
    %c0_2 = arith.constant 0 : index
    %1 = vector.load %arg2[%c0_1, %c0_2] : memref<16x1xi32, #tpu.memory_space<vmem>>, vector<16x1xi32>
    %cst = arith.constant dense<0xFF800000> : vector<16xf32>
    %2 = vector.multi_reduction <maximumf>, %0, %cst [1] : vector<16x32xf32> to vector<16xf32>
    %3 = vector.shape_cast %2 : vector<16xf32> to vector<16x1xf32>
    %4 = vector.broadcast %3 : vector<16x1xf32> to vector<16x32xf32>
    %5 = arith.subf %0, %4 : vector<16x32xf32>
    %6 = math.exp %5 : vector<16x32xf32>
    %cst_3 = arith.constant dense<0.000000e+00> : vector<16xf32>
    %7 = vector.multi_reduction <add>, %6, %cst_3 [1] : vector<16x32xf32> to vector<16xf32>
    %8 = vector.shape_cast %7 : vector<16xf32> to vector<16x1xf32>
    %9 = math.log %8 : vector<16x1xf32>
    %10 = arith.addf %3, %9 : vector<16x1xf32>
    %11 = tpu.iota {dimensions = array<i32: 1>} : vector<16x32xi32>
    %12 = vector.broadcast %1 : vector<16x1xi32> to vector<16x32xi32>
    %13 = arith.cmpi eq, %11, %12 : vector<16x32xi32>
    %cst_4 = arith.constant 0.000000e+00 : f32
    %14 = vector.broadcast %cst_4 : f32 to vector<16x32xf32>
    %15 = arith.select %13, %0, %14 : vector<16x32xi1>, vector<16x32xf32>
    %cst_5 = arith.constant dense<0.000000e+00> : vector<16xf32>
    %16 = vector.multi_reduction <add>, %15, %cst_5 [1] : vector<16x32xf32> to vector<16xf32>
    %17 = vector.shape_cast %16 : vector<16xf32> to vector<16x1xf32>
    %18 = arith.subf %10, %17 : vector<16x1xf32>
    %cst_6 = arith.constant 3.200000e+01 : f32
    %19 = vector.broadcast %cst_6 : f32 to vector<16x1xf32>
    %20 = arith.mulf %19, %10 : vector<16x1xf32>
    %cst_7 = arith.constant dense<0.000000e+00> : vector<16xf32>
    %21 = vector.multi_reduction <add>, %0, %cst_7 [1] : vector<16x32xf32> to vector<16xf32>
    %22 = vector.shape_cast %21 : vector<16xf32> to vector<16x1xf32>
    %23 = arith.subf %20, %22 : vector<16x1xf32>
    %c16_i32 = arith.constant 16 : i32
    %24 = arith.muli %arg0, %c16_i32 : i32
    %25 = tpu.iota {dimensions = array<i32: 0>} : vector<16x1xi32>
    %26 = vector.broadcast %24 : i32 to vector<16x1xi32>
    %27 = arith.addi %26, %25 : vector<16x1xi32>
    %c16_i32_8 = arith.constant 16 : i32
    %28 = vector.broadcast %c16_i32_8 : i32 to vector<16x1xi32>
    %29 = arith.cmpi slt, %27, %28 : vector<16x1xi32>
    %cst_9 = arith.constant 0.000000e+00 : f32
    %30 = vector.broadcast %cst_9 : f32 to vector<16x1xf32>
    %31 = arith.select %29, %18, %30 : vector<16x1xi1>, vector<16x1xf32>
    %c0_10 = arith.constant 0 : index
    %c0_11 = arith.constant 0 : index
    %32 = vector.load %arg3[%c0_10, %c0_11] : memref<16x1xf32, #tpu.memory_space<vmem>>, vector<16x1xf32>
    tpu.vector_store %arg3[%c0_10, %c0_11], %31 {strides = array<i32>} : memref<16x1xf32, #tpu.memory_space<vmem>>, vector<16x1xf32>,
    %cst_12 = arith.constant 0.000000e+00 : f32
    %33 = vector.broadcast %cst_12 : f32 to vector<16x1xf32>
    %34 = arith.select %29, %23, %33 : vector<16x1xi1>, vector<16x1xf32>
    %c0_13 = arith.constant 0 : index
    %c0_14 = arith.constant 0 : index
    %35 = vector.load %arg4[%c0_13, %c0_14] : memref<16x1xf32, #tpu.memory_space<vmem>>, vector<16x1xf32>
    tpu.vector_store %arg4[%c0_13, %c0_14], %34 {strides = array<i32>} : memref<16x1xf32, #tpu.memory_space<vmem>>, vector<16x1xf32>,
    return
  }
  func.func @transform_0(%arg0: i32) -> (i32, i32) {
    %c0_i32 = arith.constant 0 : i32
    %c0_i32_0 = arith.constant 0 : i32
    return %arg0, %c0_i32 : i32, i32
  }
  func.func @transform_1(%arg0: i32) -> (i32, i32) {
    %c0_i32 = arith.constant 0 : i32
    %c0_i32_0 = arith.constant 0 : i32
    return %arg0, %c0_i32 : i32, i32
  }
  func.func @transform_2(%arg0: i32) -> (i32, i32) {
    %c0_i32 = arith.constant 0 : i32
    %c0_i32_0 = arith.constant 0 : i32
    return %arg0, %c0_i32 : i32, i32
  }
  func.func @transform_3(%arg0: i32) -> (i32, i32) {
    %c0_i32 = arith.constant 0 : i32
    %c0_i32_0 = arith.constant 0 : i32
    return %arg0, %c0_i32 : i32, i32
  }
}

</mosaic_0001>

<llo_original>
// kernel: tpu_custom_call.1
$region0: #{tpu_custom_call.1}
  #allocation0 [shape = 'u32[]', space=smem, size = 0x4, offset = 0x4, fixed_abs, tag = 'smem constant byte address 0x4 - core index']
  #allocation1 [shape = 'u32[144,128]{1,0:T(1,128)}', space=vmem, size = 0x12000, scoped, tag = 'internal scratch']
  %s0 = inlined_call_operand.vmem [shape: f32[16,32], index: 0, kind: input, shape index: {}]
  %s1 = inlined_call_operand.vmem [shape: s32[16,1], index: 1, kind: input, shape index: {}]
  %s2 = inlined_call_operand.vmem [shape: f32[16,1], index: 2, kind: output, shape index: {0}]
  %s3 = inlined_call_operand.vmem [shape: f32[16,1], index: 3, kind: output, shape index: {1}]
  %4 = xla_tuple %s2, %s3
  %s5 = sld [smem:[#allocation0]]
  $region26: #{tpu_custom_call.1} parent=0
    _
  %s7 = ssub.s32 1, %s5
  %s8 = scalar_select 0, %s7, %s5
  // Predicated region
  $region2: #{tpu_custom_call.1} parent=0 // pred_check
    _
  $region3: #{tpu_custom_call.1} parent=0 // pred_check_branch
    %10 = sbr.rel (0) target = $region5
  $region4: #{tpu_custom_call.1} parent=0 // pred_region
    _
  $region5: #{tpu_custom_call.1} parent=0 // pred_fallthru
    _
  // Predicated region
  $region6: #{tpu_custom_call.1} parent=0 // pred_check
    _
  $region7: #{tpu_custom_call.1} parent=0 // pred_check_branch
    %12 = sbr.rel (0) target = $region9
  $region8: #{tpu_custom_call.1} parent=0 // pred_region
    _
  $region9: #{tpu_custom_call.1} parent=0 // pred_fallthru
    _
  %v13 = vld [vmem:[%s0] sm:$0xff]
  %v14 = vld [vmem:[%s0 + $0x8] sm:$0xff]
  %v15 = vld [vmem:[%s1] sm:$0xff]
  %v16 = vld [vmem:[%s1 + $0x8] sm:$0xff]
  %vm17 = vcmask 261120
  %v18 = vsel %vm17, %v13, -inf
  %19 = vmax.xlane.f32.xlu0 %v18
  %v20 = vpop.xlane.xlu0 %19
  %v21 = vsel %vm17, %v14, -inf
  %22 = vmax.xlane.f32.xlu0 %v21
  %v23 = vpop.xlane.xlu0 %22
  %v24 = vsub.f32 %v13, %v20
  %v25 = vsub.f32 %v14, %v23
  %v26 = vmul.f32 %v24, 1.442695
  %v27 = vpow.pop %v26
  %v28 = vmul.f32 %v25, 1.442695
  %v29 = vpow.pop %v28
  %v30 = vsel %vm17, %v27, 0.0
  %31 = vadd.xlane.f32.xlu0 %v30
  %v32 = vpop.xlane.xlu0 %31
  %v33 = vsel %vm17, %v29, 0.0
  %34 = vadd.xlane.f32.xlu0 %v33
  %v35 = vpop.xlane.xlu0 %34
  %v36 = vlog2.pop %v32
  %v37 = vmul.f32 %v36, 0.6931472
  %v38 = vlog2.pop %v35
  %v39 = vmul.f32 %v38, 0.6931472
  %v40 = vadd.f32 %v20, %v37
  %v41 = vadd.f32 %v23, %v39
  %v42 = vlaneseq
  %v43 = vand.u32 %v42, 127
  %44 = vset.pattern.permute.xlu0 0
  %45 = vperm.xlu0 %44, %v15
  %v46 = vpop.permute.xlu0 %45
  %47 = vset.pattern.permute.xlu0 0
  %48 = vperm.xlu0 %47, %v16
  %v49 = vpop.permute.xlu0 %48
  %vm50 = vcmp.eq.s32.totalorder %v43, %v46
  %vm51 = vcmp.eq.s32.totalorder %v43, %v49
  %v52 = vsel %vm50, %v13, 0.0
  %v53 = vsel %vm51, %v14, 0.0
  %v54 = vsel %vm17, %v52, 0.0
  %55 = vadd.xlane.f32.xlu0 %v54
  %v56 = vpop.xlane.xlu0 %55
  %v57 = vsel %vm17, %v53, 0.0
  %58 = vadd.xlane.f32.xlu0 %v57
  %v59 = vpop.xlane.xlu0 %58
  %v60 = vsub.f32 %v40, %v56
  %v61 = vsub.f32 %v41, %v59
  %v62 = vmul.f32 %v40, 32.0
  %v63 = vmul.f32 %v41, 32.0
  %v64 = vsel %vm17, %v13, 0.0
  %65 = vadd.xlane.f32.xlu0 %v64
  %v66 = vpop.xlane.xlu0 %65
  %v67 = vsel %vm17, %v14, 0.0
  %68 = vadd.xlane.f32.xlu0 %v67
  %v69 = vpop.xlane.xlu0 %68
  %v70 = vsub.f32 %v62, %v66
  %v71 = vsub.f32 %v63, %v69
  %s72 = smul.u32 0, 16
  %v73 = vlaneseq
  %v74 = vshrl.u32 %v73, 7
  %v75 = vadd.s32 %v74, 8
  %v76 = vstv %s72
  %v77 = vadd.s32 %v76, %v74
  %v78 = vadd.s32 %v76, %v75
  %vm79 = vcmp.lt.s32.totalorder %v77, 16
  %vm80 = vcmp.lt.s32.totalorder %v78, 16
  %v81 = vsel %vm79, %v60, 0.0
  %v82 = vsel %vm80, %v61, 0.0
  %vm83 = vcmask 7168
  %84 = vst.msk [vmem:[%s2] sm:$0xff] %vm83, %v81
  %85 = vst.msk [vmem:[%s2 + $0x8] sm:$0xff] %vm83, %v82
  %v86 = vsel %vm79, %v70, 0.0
  %v87 = vsel %vm80, %v71, 0.0
  %88 = vst.msk [vmem:[%s3] sm:$0xff] %vm83, %v86
  %89 = vst.msk [vmem:[%s3 + $0x8] sm:$0xff] %vm83, %v87
  // Predicated region
  $region10: #{tpu_custom_call.1} parent=0 // pred_check
    _
  $region11: #{tpu_custom_call.1} parent=0 // pred_check_branch
    %91 = sbr.rel (0) target = $region13
  $region12: #{tpu_custom_call.1} parent=0 // pred_region
    _
  $region13: #{tpu_custom_call.1} parent=0 // pred_fallthru
    _
  // Predicated region
  $region14: #{tpu_custom_call.1} parent=0 // pred_check
    _
  $region15: #{tpu_custom_call.1} parent=0 // pred_check_branch
    %93 = sbr.rel (0) target = $region17
  $region16: #{tpu_custom_call.1} parent=0 // pred_region
    _
  $region17: #{tpu_custom_call.1} parent=0 // pred_fallthru
    _
  // Predicated region
  $region18: #{tpu_custom_call.1} parent=0 // pred_check
    _
  $region19: #{tpu_custom_call.1} parent=0 // pred_check_branch
    %95 = sbr.rel (0) target = $region21
  $region20: #{tpu_custom_call.1} parent=0 // pred_region
    _
  $region21: #{tpu_custom_call.1} parent=0 // pred_fallthru
    _
  // Predicated region
  $region22: #{tpu_custom_call.1} parent=0 // pred_check
    _
  $region23: #{tpu_custom_call.1} parent=0 // pred_check_branch
    %97 = sbr.rel (0) target = $region25
  $region24: #{tpu_custom_call.1} parent=0 // pred_region
    _
  $region25: #{tpu_custom_call.1} parent=0 // pred_fallthru
    _

</llo_original>
